<compile_context>
chip_gen: v5e
topology: v5e:2x2
jax: 0.10.0
libtpu: 0.0.40
codegen_flags: <defaults>
</compile_context>

<pallas_src>
import functools

import jax
import jax.numpy as jnp
from jax.experimental import pallas as pl
from jax.experimental.pallas import tpu as pltpu


def _round_up(x, m):
    return ((x + m - 1) // m) * m


def _sublane(dtype):
    # Packed sublane tile: 8 rows for 4-byte dtypes, 16 for 2-byte, 32 for 1-byte.
    return max(8, 32 // jnp.dtype(dtype).itemsize)


def _pick_tile(dim, pref, align):
    """Tile <= pref (multiple of `align`) minimizing padding of `dim`; ties -> largest."""
    dim_al = _round_up(max(int(dim), 1), align)
    if dim_al <= pref:
        return dim_al
    best_t, best_pad = align, _round_up(dim_al, align)
    t = align
    while t <= pref:
        padded = _round_up(dim_al, t)
        if padded < best_pad or (padded == best_pad and t > best_t):
            best_t, best_pad = t, padded
        t += align
    return best_t


# --- kernels ------------------------------------------------------------------


def _linear_kernel_f32(x_ref, w_ref, b_ref, o_ref):
    # f32 output: accumulate directly into the resident output tile.
    k = pl.program_id(2)

    @pl.when(k == 0)
    def _():
        # Seed with the bias (added exactly once per output tile).
        o_ref[...] = jnp.broadcast_to(
            b_ref[...].astype(jnp.float32), o_ref.shape
        )

    o_ref[...] += jnp.dot(
        x_ref[...], w_ref[...], preferred_element_type=jnp.float32
    )


def _linear_kernel_acc(x_ref, w_ref, b_ref, o_ref, acc_ref):
    # Low-precision output: f32 scratch accumulator, single cast at the end.
    k = pl.program_id(2)

    @pl.when(k == 0)
    def _():
        acc_ref[...] = jnp.broadcast_to(
            b_ref[...].astype(jnp.float32), acc_ref.shape
        )

    acc_ref[...] += jnp.dot(
        x_ref[...], w_ref[...], preferred_element_type=jnp.float32
    )

    @pl.when(k == pl.num_programs(2) - 1)
    def _():
        o_ref[...] = acc_ref[...].astype(o_ref.dtype)


# --- wrapper ------------------------------------------------------------------


def prepare_params(w, b):
    """Pad W.T / b ONCE (at init) to 128-aligned shapes.

    Returns (w_t_padded, b_padded, out_dim); pass these to linear_layer with
    out_dim=... so no weight copy ever happens per call.
    """
    out_dim, in_dim = w.shape
    k_pad = _round_up(in_dim, 128)
    n_pad = _round_up(out_dim, 128)
    w_t = w.T
    if (k_pad, n_pad) != (in_dim, out_dim):
        w_t = jnp.pad(w_t, ((0, k_pad - in_dim), (0, n_pad - out_dim)))
        b = jnp.pad(b, (0, n_pad - out_dim))
    return w_t, b, out_dim


@functools.partial(
    jax.jit, static_argnames=("out_dim", "tm", "tn", "tk", "w_buffers")
)
def linear_layer(x, w_t, b, *, out_dim=None, tm=512, tn=512, tk=1024,
                 w_buffers=2):
    """y = x @ w_t + b, with w_t = W.T (possibly pre-padded via prepare_params).

    Matches PyTorch F.linear(x, W, b).
    """
    B, in_dim = x.shape
    k_w, n_w = w_t.shape
    assert k_w >= in_dim, "weight K dim must be >= x's feature dim"
    true_out = n_w if out_dim is None else out_dim
    dtype = x.dtype
    sub = _sublane(dtype)
    item = jnp.dtype(dtype).itemsize
    wbuf = max(2, w_buffers)

    # Tiles that hug the true (aligned) dims — no power-of-two blowup.
    tm = _pick_tile(B, tm, sub)
    tn = _pick_tile(n_w, tn, 128)
    tk = _pick_tile(k_w, tk, 128)

    # Conservative v7x-safe VMEM budget (double-buffering + f32 acc counted).
    def _footprint(tm_, tn_, tk_):
        return (2 * tm_ * tk_ * item        # x tiles
                + wbuf * tk_ * tn_ * item   # w tiles
                + 2 * tm_ * tn_ * item      # output tiles
                + tm_ * tn_ * 4             # f32 accumulator (worst case)
                + 2 * tn_ * item)           # bias

    budget = 48 * 1024 * 1024
    while _footprint(tm, tn, tk) > budget and tk > 128:
        tk = _pick_tile(k_w, max(128, tk // 2), 128)
    while _footprint(tm, tn, tk) > budget and tn > 128:
        tn = _pick_tile(n_w, max(128, tn // 2), 128)

    M = _round_up(B, tm)
    N = _round_up(n_w, tn)
    K = _round_up(k_w, tk)

    # Keep >=2 tiles on a parallel axis when possible (v7x has 2 TensorCores).
    if M // tm == 1 and N // tn == 1:
        if N >= 256:
            tn = _pick_tile(n_w, max(128, tn // 2), 128)
            N = _round_up(n_w, tn)
        elif M >= 2 * sub:
            tm = _pick_tile(B, max(sub, tm // 2), sub)
            M = _round_up(B, tm)

    # Pad only when actually needed (static shape checks -> no-op for
    # pre-padded weights / aligned dims). x is the only per-call pad, and
    # only if B or in_dim is unaligned.
    x_p = x if (M == B and K == in_dim) else jnp.pad(
        x, ((0, M - B), (0, K - in_dim)))
    w_p = w_t if (K == k_w and N == n_w) else jnp.pad(
        w_t, ((0, K - k_w), (0, N - n_w)))
    b_p = jnp.reshape(b, (1, -1))
    if b_p.shape[1] != N:
        b_p = jnp.pad(b_p, ((0, 0), (0, N - b_p.shape[1])))

    grid = (M // tm, N // tn, K // tk)

    # Cost from the true problem size, not the padded one.
    cost = pl.CostEstimate(
        flops=2 * B * true_out * in_dim,
        transcendentals=0,
        bytes_accessed=(B * in_dim * x.dtype.itemsize
                        + in_dim * true_out * w_t.dtype.itemsize
                        + true_out * b.dtype.itemsize
                        + B * true_out * item),
    )

    if w_buffers > 2:
        # Deeper weight pipelining for DMA-latency-bound cases (v5e).
        w_spec = pl.BlockSpec((tk, tn), lambda i, j, k: (k, j),
                              pipeline_mode=pl.Buffered(w_buffers))
    else:
        w_spec = pl.BlockSpec((tk, tn), lambda i, j, k: (k, j))

    if jnp.dtype(dtype) == jnp.float32:
        kernel = _linear_kernel_f32
        scratch = []
    else:
        kernel = _linear_kernel_acc
        scratch = [pltpu.VMEM((tm, tn), jnp.float32)]

    vmem_limit = int(min(64 * 1024 * 1024,
                         max(32 * 1024 * 1024,
                             _footprint(tm, tn, tk) + (8 << 20))))

    y_p = pl.pallas_call(
        kernel,
        out_shape=jax.ShapeDtypeStruct((M, N), dtype),
        grid_spec=pltpu.PrefetchScalarGridSpec(
            num_scalar_prefetch=0,
            grid=grid,
            in_specs=[
                pl.BlockSpec((tm, tk), lambda i, j, k: (i, k)),
                w_spec,
                # Bias tile ignores k -> stays resident across the reduction.
                pl.BlockSpec((1, tn), lambda i, j, k: (0, j)),
            ],
            out_specs=pl.BlockSpec((tm, tn), lambda i, j, k: (i, j)),
            scratch_shapes=scratch,
        ),
        compiler_params=pltpu.CompilerParams(
            dimension_semantics=("parallel", "parallel", "arbitrary"),
            vmem_limit_bytes=vmem_limit,
        ),
        cost_estimate=cost,
    )(x_p, w_p, b_p)

    if M == B and N == true_out:
        return y_p
    return y_p[:B, :true_out]


def init_params(key, in_dim, out_dim):
    """Deterministic xavier-normal weight (as in xavier_init) and zero bias."""
    std = (2.0 / (in_dim + out_dim)) ** 0.5
    w = jax.random.normal(key, (out_dim, in_dim), dtype=jnp.float32) * std
    b = jnp.zeros((out_dim,), dtype=jnp.float32)
    return w, b


if __name__ == "__main__":
    key = jax.random.PRNGKey(0)
    k_x, k_w, k_x2, k_w2 = jax.random.split(key, 4)

    # Small shape consistent with the module (exercises the padded path).
    batch, in_dim, out_dim = 8, 32, 16
    x = jax.random.normal(k_x, (batch, in_dim), dtype=jnp.float32)
    w, b = init_params(k_w, in_dim, out_dim)

    y = jax.block_until_ready(linear_layer(x, w.T, b))
    y_ref = jnp.matmul(x, w.T, precision=jax.lax.Precision.HIGHEST) + b
    assert y.shape == (batch, out_dim)
    assert jnp.allclose(y, y_ref, atol=1e-5, rtol=1e-5)

    # Larger non-power-of-two shape: multi-tile (i, j, k) grid, resident-output
    # accumulation across K, megacore split on N, and the pre-padded
    # (zero-copy) weight path.
    batch2, in_dim2, out_dim2 = 384, 1536, 384
    x2 = jax.random.normal(k_x2, (batch2, in_dim2), dtype=jnp.float32)
    w2, b2 = init_params(k_w2, in_dim2, out_dim2)
    b2 = b2 + 0.5  # non-zero bias to also verify the bias path
    w2_t_p, b2_p, od2 = prepare_params(w2, b2)  # padded once, reused per call

    y2 = jax.block_until_ready(linear_layer(x2, w2_t_p, b2_p, out_dim=od2))
    y2_ref = jnp.matmul(x2, w2.T, precision=jax.lax.Precision.HIGHEST) + b2
    assert y2.shape == (batch2, out_dim2)
    assert jnp.allclose(y2, y2_ref, atol=5e-4, rtol=1e-4)

    print("KERNEL_OK")
</pallas_src>

<mosaic_0001>
module attributes {stable_mosaic.version = 11 : i64} {
  func.func @_linear_kernel_f32(%arg0: i32, %arg1: i32, %arg2: i32, %arg3: memref<8x128xf32, #tpu.memory_space<vmem>>, %arg4: memref<128x128xf32, #tpu.memory_space<vmem>>, %arg5: memref<1x128xf32, #tpu.memory_space<vmem>>, %arg6: memref<8x128xf32, #tpu.memory_space<vmem>>) attributes {dimension_semantics = [#tpu.dimension_semantics<parallel>, #tpu.dimension_semantics<parallel>, #tpu.dimension_semantics<arbitrary>], iteration_bounds = array<i64: 1, 1, 1>, scalar_prefetch = 0 : i64, scratch_operands = 0 : i64, tpu.core_type = #tpu.core_type<tc>, window_params = [{transform_indices = @transform_0, window_bounds = array<i64: 8, 128>}, {transform_indices = @transform_1, window_bounds = array<i64: 128, 128>}, {transform_indices = @transform_2, window_bounds = array<i64: 1, 128>}, {transform_indices = @transform_3, window_bounds = array<i64: 8, 128>}]} {
    %c0_i32 = arith.constant 0 : i32
    %0 = arith.cmpi eq, %arg2, %c0_i32 : i32
    %1 = arith.extui %0 : i1 to i32
    %c0_i32_0 = arith.constant 0 : i32
    %2 = arith.cmpi ne, %1, %c0_i32_0 : i32
    scf.if %2 {
      %c0_8 = arith.constant 0 : index
      %c0_9 = arith.constant 0 : index
      %9 = vector.load %arg5[%c0_8, %c0_9] : memref<1x128xf32, #tpu.memory_space<vmem>>, vector<1x128xf32>
      %10 = vector.shape_cast %9 : vector<1x128xf32> to vector<1x128xf32>
      %11 = vector.broadcast %10 : vector<1x128xf32> to vector<8x128xf32>
      %c0_10 = arith.constant 0 : index
      %c0_11 = arith.constant 0 : index
      %12 = vector.load %arg6[%c0_10, %c0_11] : memref<8x128xf32, #tpu.memory_space<vmem>>, vector<8x128xf32>
      tpu.vector_store %arg6[%c0_10, %c0_11], %11 {strides = array<i32>} : memref<8x128xf32, #tpu.memory_space<vmem>>, vector<8x128xf32>,
    } else {
    }
    %c0 = arith.constant 0 : index
    %c0_1 = arith.constant 0 : index
    %3 = vector.load %arg6[%c0, %c0_1] : memref<8x128xf32, #tpu.memory_space<vmem>>, vector<8x128xf32>
    %c0_2 = arith.constant 0 : index
    %c0_3 = arith.constant 0 : index
    %4 = vector.load %arg3[%c0_2, %c0_3] : memref<8x128xf32, #tpu.memory_space<vmem>>, vector<8x128xf32>
    %c0_4 = arith.constant 0 : index
    %c0_5 = arith.constant 0 : index
    %5 = vector.load %arg4[%c0_4, %c0_5] : memref<128x128xf32, #tpu.memory_space<vmem>>, vector<128x128xf32>
    %cst = arith.constant dense<0.000000e+00> : vector<8x128xf32>
    %6 = tpu.matmul %4, %5, %cst {dimension_numbers = #tpu.dot_dimension_numbers<[1], [0], [0], [1], [0, 0, 1, 1], [], []>} : vector<8x128xf32>, vector<128x128xf32>, vector<8x128xf32> -> vector<8x128xf32>
    %7 = arith.addf %3, %6 : vector<8x128xf32>
    %c0_6 = arith.constant 0 : index
    %c0_7 = arith.constant 0 : index
    %8 = vector.load %arg6[%c0_6, %c0_7] : memref<8x128xf32, #tpu.memory_space<vmem>>, vector<8x128xf32>
    tpu.vector_store %arg6[%c0_6, %c0_7], %7 {strides = array<i32>} : memref<8x128xf32, #tpu.memory_space<vmem>>, vector<8x128xf32>,
    return
  }
  func.func @transform_0(%arg0: i32, %arg1: i32, %arg2: i32) -> (i32, i32) {
    %c0_i32 = arith.constant 0 : i32
    return %arg0, %arg2 : i32, i32
  }
  func.func @transform_1(%arg0: i32, %arg1: i32, %arg2: i32) -> (i32, i32) {
    %c0_i32 = arith.constant 0 : i32
    return %arg2, %arg1 : i32, i32
  }
  func.func @transform_2(%arg0: i32, %arg1: i32, %arg2: i32) -> (i32, i32) {
    %c0_i32 = arith.constant 0 : i32
    %c0_i32_0 = arith.constant 0 : i32
    return %c0_i32, %arg1 : i32, i32
  }
  func.func @transform_3(%arg0: i32, %arg1: i32, %arg2: i32) -> (i32, i32) {
    %c0_i32 = arith.constant 0 : i32
    return %arg0, %arg1 : i32, i32
  }
}

</mosaic_0001>

<llo_original>
// kernel: linear_layer.1
$region0: #{linear_layer.1}
  #allocation0 [shape = 'u32[]', space=smem, size = 0x4, offset = 0x4, fixed_abs, tag = 'smem constant byte address 0x4 - core index']
  #allocation1 [shape = 'u32[72,128]{1,0:T(1,128)}', space=vmem, size = 0x9000, scoped, tag = 'internal scratch']
  %s0 = inlined_call_operand.vmem [shape: f32[8,128], index: 0, kind: input, shape index: {}]
  %s1 = inlined_call_operand.vmem [shape: f32[128,128], index: 1, kind: input, shape index: {}]
  %s2 = inlined_call_operand.vmem [shape: f32[1,128], index: 2, kind: input, shape index: {}]
  %s3 = inlined_call_operand.hbm [shape: f32[8,128], index: 3, kind: output, shape index: {}]
  %s4 = sld [smem:[#allocation0]]
  $region26: #{linear_layer.1} parent=0
    _
  %s6 = ssub.s32 1, %s4
  %s7 = scalar_select 0, %s6, %s4
  $region1: #{linear_layer.1} parent=0
    #allocation2 [shape = 'u8[4096]{0}', space=vmem, size = 0x1000, scoped, tag = 'output window, operand 0, single buffered']
    #allocation3 [shape = 's32[1]{0}', space=sflag, size = 0x4, scoped, tag = 'scoped memory for linear_layer.1']
    %8 = vsyncpa [#allocation3], 0
    // Predicated region
    $region2: #{linear_layer.1} parent=1 // pred_check
      _
    $region3: #{linear_layer.1} parent=1 // pred_check_branch
      %10 = sbr.rel (0) target = $region5
    $region4: #{linear_layer.1} parent=1 // pred_region
      _
    $region5: #{linear_layer.1} parent=1 // pred_fallthru
      _
    // Predicated region
    $region6: #{linear_layer.1} parent=1 // pred_check
      _
    $region7: #{linear_layer.1} parent=1 // pred_check_branch
      %12 = sbr.rel (0) target = $region9
    $region8: #{linear_layer.1} parent=1 // pred_region
      _
    $region9: #{linear_layer.1} parent=1 // pred_fallthru
      _
    // Predicated region
    $region10: #{linear_layer.1} parent=1 // pred_check
      _
    $region11: #{linear_layer.1} parent=1 // pred_check_branch
      %14 = sbr.rel (0) target = $region13
    $region12: #{linear_layer.1} parent=1 // pred_region
      _
    $region13: #{linear_layer.1} parent=1 // pred_fallthru
      _
    %p15 = scmp.eq.s32.totalorder 0, 0
    // Predicated region
    $region14: #{linear_layer.1} parent=1 // pred_check
      %p16 = pneg %p15
    $region15: #{linear_layer.1} parent=1 // pred_check_branch
      %18 = sbr.rel (%p16) target = $region17
    $region16: #{linear_layer.1} parent=1 // pred_region
      %v19 = vld [vmem:[%s2] sm:$0x1]
      %v21 = vperm.slane %v19, 0
      %23 = vst [vmem:[#allocation2] sm:$0xff] %v21
    $region17: #{linear_layer.1} parent=1 // pred_fallthru
      _
    %v24 = vld [vmem:[#allocation2] sm:$0xff]
    %v25 = vld [vmem:[%s0] sm:$0xff]
    %v26 = vld [vmem:[%s1] sm:$0xff]
    %v27 = vld [vmem:[%s1 + $0x8] sm:$0xff]
    %v28 = vld [vmem:[%s1 + $0x10] sm:$0xff]
    %v29 = vld [vmem:[%s1 + $0x18] sm:$0xff]
    %v30 = vld [vmem:[%s1 + $0x20] sm:$0xff]
    %v31 = vld [vmem:[%s1 + $0x28] sm:$0xff]
    %v32 = vld [vmem:[%s1 + $0x30] sm:$0xff]
    %v33 = vld [vmem:[%s1 + $0x38] sm:$0xff]
    %v34 = vld [vmem:[%s1 + $0x40] sm:$0xff]
    %v35 = vld [vmem:[%s1 + $0x48] sm:$0xff]
    %v36 = vld [vmem:[%s1 + $0x50] sm:$0xff]
    %v37 = vld [vmem:[%s1 + $0x58] sm:$0xff]
    %v38 = vld [vmem:[%s1 + $0x60] sm:$0xff]
    %v39 = vld [vmem:[%s1 + $0x68] sm:$0xff]
    %v40 = vld [vmem:[%s1 + $0x70] sm:$0xff]
    %v41 = vld [vmem:[%s1 + $0x78] sm:$0xff]
    %42 = vmatpush.msra.mxu0 %v41
    %43 = vmatpush.msra.mxu0 %v40
    %44 = vmatpush.msra.mxu0 %v39
    %45 = vmatpush.msra.mxu0 %v38
    %46 = vmatpush.msra.mxu0 %v37
    %47 = vmatpush.msra.mxu0 %v36
    %48 = vmatpush.msra.mxu0 %v35
    %49 = vmatpush.msra.mxu0 %v34
    %50 = vmatpush.msra.mxu0 %v33
    %51 = vmatpush.msra.mxu0 %v32
    %52 = vmatpush.msra.mxu0 %v31
    %53 = vmatpush.msra.mxu0 %v30
    %54 = vmatpush.msra.mxu0 %v29
    %55 = vmatpush.msra.mxu0 %v28
    %56 = vmatpush.msra.mxu0 %v27
    %57 = vmatpush.msra.mxu0 %v26
    %58 = vmatmul.f32.gmra.mxu0 %v25
    %v59 = vpop.f32.mrf.mxu0
    %v60 = vadd.f32 0.0, %v59
    %61 = vdwg.mxu0
    %v62 = vadd.f32 %v24, %v60
    %63 = vst [vmem:[#allocation2] sm:$0xff] %v62
    // Predicated region
    $region18: #{linear_layer.1} parent=1 // pred_check
      _
    $region19: #{linear_layer.1} parent=1 // pred_check_branch
      %65 = sbr.rel (0) target = $region21
    $region20: #{linear_layer.1} parent=1 // pred_region
      %67 = vsyncadd [#allocation3], 0
      %s69 = sshll.u32 [#allocation2], 4
      %s70 = int_to_ptr.vmem [resolvable:$true] %s69
      %s71 = sshll.u32 %s3, 4
      %s72 = int_to_ptr.hbm [resolvable:$true] %s71
      %74 = dma.vmem_to_hbm [thread:$0]  %s70, 128, %s72, [#allocation3]
    $region21: #{linear_layer.1} parent=1 // pred_fallthru
      _
    // Predicated region
    $region22: #{linear_layer.1} parent=1 // pred_check
      _
    $region23: #{linear_layer.1} parent=1 // pred_check_branch
      %76 = sbr.rel (0) target = $region25
    $region24: #{linear_layer.1} parent=1 // pred_region
      %78 = dma.done [#allocation3], 128
    $region25: #{linear_layer.1} parent=1 // pred_fallthru
      _
    %79 = vsyncpa [#allocation3], 1

</llo_original>
